<compile_context>
chip_gen: v6e
topology: v6e:2x2x1
jax: 0.10.0
libtpu: 0.0.40
codegen_flags: <defaults>
</compile_context>

<pallas_src>
import functools

import jax
import jax.numpy as jnp
from jax.experimental import pallas as pl
from jax.experimental.pallas import tpu as pltpu


def _fused_gemm_kernel(x_ref, w_ref, o_ref):
    """Single fused GEMM: o = x @ W_fused (both heads' columns side by side)."""
    o_ref[...] = jnp.dot(
        x_ref[...], w_ref[...], preferred_element_type=jnp.float32
    ).astype(o_ref.dtype)


def _round_up(n, m):
    return ((n + m - 1) // m) * m


@functools.partial(jax.jit, static_argnames=("tb",))
def orthogonal_two_heads(x, w_ortho, w_head1, w_head2, *, tb=256):
    """Pallas forward of OrthogonalTwoHeads.

    x:       (B, d_in)
    w_ortho: (d1 + d2, d_in)   orthogonal matrix (PyTorch Linear weight layout)
    w_head1: (d1, d1)          PyTorch Linear weight layout (out, in)
    w_head2: (d2, d2)
    returns (x1, x2) with shapes (B, d1), (B, d2)
    """
    B, d_in = x.shape
    d1 = w_head1.shape[0]
    d2 = w_head2.shape[0]
    assert w_ortho.shape == (d1 + d2, d_in)

    # ---- one-time weight folding (plain JAX, static params) -----------------
    #   x1 = x @ (Wo[:d1].T @ W1.T),   x2 = x @ (Wo[d1:].T @ W2.T)
    hi = jax.lax.Precision.HIGHEST
    m1 = jnp.dot(w_ortho[:d1, :].T, w_head1.T, precision=hi)   # (d_in, d1)
    m2 = jnp.dot(w_ortho[d1:, :].T, w_head2.T, precision=hi)   # (d_in, d2)
    w_fused = jnp.concatenate([m1, m2], axis=1)                # (d_in, d1+d2)

    # Lane-dense output: pad the fused output dim to a multiple of 128 so the
    # MXU pushes and output stores are full-width; padding columns are zeros.
    D = d1 + d2
    Dp = _round_up(D, 128)
    if Dp != D:
        w_fused = jnp.pad(w_fused, ((0, 0), (0, Dp - D)))
    w_fused = w_fused.astype(x.dtype)

    # Batch tiling: largest tile <= tb, multiple of the f32 sublane granule (8).
    # Pad the batch so grid = cdiv covers it exactly (no B % tb restriction).
    tb_eff = _round_up(min(tb, _round_up(B, 8)), 8)
    Bp = _round_up(B, tb_eff)
    if Bp != B:
        x = jnp.pad(x, ((0, Bp - B), (0, 0)))

    grid = (Bp // tb_eff,)
    out = pl.pallas_call(
        _fused_gemm_kernel,
        out_shape=jax.ShapeDtypeStruct((Bp, Dp), x.dtype),
        grid_spec=pltpu.PrefetchScalarGridSpec(
            num_scalar_prefetch=0,
            grid=grid,
            in_specs=[
                pl.BlockSpec((tb_eff, d_in), lambda i: (i, 0)),  # x tile over batch
                pl.BlockSpec((d_in, Dp), lambda i: (0, 0)),      # fused weight (resident)
            ],
            out_specs=pl.BlockSpec((tb_eff, Dp), lambda i: (i, 0)),
        ),
        compiler_params=pltpu.CompilerParams(
            dimension_semantics=("parallel",),
            vmem_limit_bytes=64 * 1024 * 1024,
        ),
    )(x, w_fused)

    # Free slices: strip batch padding and split the fused output into heads.
    x1 = out[:B, :d1]
    x2 = out[:B, d1:d1 + d2]
    return x1, x2


def _make_orthogonal_cayley(key, n, dtype=jnp.float32):
    """Deterministic orthogonal matrix via the Cayley map Q = (I - A)^{-1}(I + A),
    A skew-symmetric — mirrors nn.utils.parametrizations.orthogonal(..., 'cayley')."""
    m = jax.random.normal(key, (n, n), dtype=jnp.float32)
    a = 0.5 * (m - m.T)                       # skew-symmetric
    eye = jnp.eye(n, dtype=jnp.float32)
    q = jnp.linalg.solve(eye - a, eye + a)    # orthogonal
    return q.astype(dtype)


if __name__ == "__main__":
    # Small shapes consistent with the module: d_in = d_out_1 + d_out_2.
    B, d_in, d1, d2 = 8, 32, 16, 16
    key = jax.random.PRNGKey(0)
    kx, kq, k1, k2 = jax.random.split(key, 4)

    x = jax.random.normal(kx, (B, d_in), dtype=jnp.float32)

    # Deterministic synthetic parameters (no checkpoint load).
    w_ortho = _make_orthogonal_cayley(kq, d_in)[: d1 + d2, :]        # (d1+d2, d_in)
    w_head1 = jax.random.normal(k1, (d1, d1), jnp.float32) / jnp.sqrt(d1)
    w_head2 = jax.random.normal(k2, (d2, d2), jnp.float32) / jnp.sqrt(d2)

    x1, x2 = orthogonal_two_heads(x, w_ortho, w_head1, w_head2)
    jax.block_until_ready((x1, x2))

    # Pure-JAX reference check (unfolded, matching the PyTorch forward).
    hi = jax.lax.Precision.HIGHEST
    y_ref = jnp.dot(x, w_ortho.T, precision=hi)
    x1_ref = jnp.dot(y_ref[:, :d1], w_head1.T, precision=hi)
    x2_ref = jnp.dot(y_ref[:, d1:d1 + d2], w_head2.T, precision=hi)
    assert x1.shape == (B, d1) and x2.shape == (B, d2)
    assert jnp.allclose(x1, x1_ref, atol=1e-4, rtol=1e-4)
    assert jnp.allclose(x2, x2_ref, atol=1e-4, rtol=1e-4)

    print("KERNEL_OK")
</pallas_src>

<mosaic_0001>
module attributes {stable_mosaic.version = 11 : i64} {
  func.func @_fused_gemm_kernel(%arg0: i32, %arg1: memref<8x32xf32, #tpu.memory_space<vmem>>, %arg2: memref<32x128xf32, #tpu.memory_space<vmem>>, %arg3: memref<8x128xf32, #tpu.memory_space<vmem>>) attributes {dimension_semantics = [#tpu.dimension_semantics<parallel>], iteration_bounds = array<i64: 1>, scalar_prefetch = 0 : i64, scratch_operands = 0 : i64, tpu.core_type = #tpu.core_type<tc>, window_params = [{transform_indices = @transform_0, window_bounds = array<i64: 8, 32>}, {pipeline_mode = #tpu.pipeline_mode<synchronous>, transform_indices = @transform_1, window_bounds = array<i64: 32, 128>}, {transform_indices = @transform_2, window_bounds = array<i64: 8, 128>}]} {
    %c0 = arith.constant 0 : index
    %c0_0 = arith.constant 0 : index
    %0 = vector.load %arg1[%c0, %c0_0] : memref<8x32xf32, #tpu.memory_space<vmem>>, vector<8x32xf32>
    %c0_1 = arith.constant 0 : index
    %c0_2 = arith.constant 0 : index
    %1 = vector.load %arg2[%c0_1, %c0_2] : memref<32x128xf32, #tpu.memory_space<vmem>>, vector<32x128xf32>
    %cst = arith.constant dense<0.000000e+00> : vector<8x128xf32>
    %2 = tpu.matmul %0, %1, %cst {dimension_numbers = #tpu.dot_dimension_numbers<[1], [0], [0], [1], [0, 0, 1, 1], [], []>} : vector<8x32xf32>, vector<32x128xf32>, vector<8x128xf32> -> vector<8x128xf32>
    %c0_3 = arith.constant 0 : index
    %c0_4 = arith.constant 0 : index
    %3 = vector.load %arg3[%c0_3, %c0_4] : memref<8x128xf32, #tpu.memory_space<vmem>>, vector<8x128xf32>
    tpu.vector_store %arg3[%c0_3, %c0_4], %2 {strides = array<i32>} : memref<8x128xf32, #tpu.memory_space<vmem>>, vector<8x128xf32>,
    return
  }
  func.func @transform_0(%arg0: i32) -> (i32, i32) {
    %c0_i32 = arith.constant 0 : i32
    %c0_i32_0 = arith.constant 0 : i32
    return %arg0, %c0_i32 : i32, i32
  }
  func.func @transform_1(%arg0: i32) -> (i32, i32) {
    %c0_i32 = arith.constant 0 : i32
    %c0_i32_0 = arith.constant 0 : i32
    %c0_i32_1 = arith.constant 0 : i32
    return %c0_i32, %c0_i32_0 : i32, i32
  }
  func.func @transform_2(%arg0: i32) -> (i32, i32) {
    %c0_i32 = arith.constant 0 : i32
    %c0_i32_0 = arith.constant 0 : i32
    return %arg0, %c0_i32 : i32, i32
  }
}

</mosaic_0001>

<llo_original>
// kernel: orthogonal_two_heads.1
$region0: #{orthogonal_two_heads.1}
  #allocation0 [shape = 'u32[]', space=smem, size = 0x4, offset = 0x4, fixed_abs, tag = 'smem constant byte address 0x4 - core index']
  #allocation1 [shape = 'u32[144,128]{1,0:T(1,128)}', space=vmem, size = 0x12000, scoped, tag = 'internal scratch']
  %s0 = inlined_call_operand.vmem [shape: f32[8,32], index: 0, kind: input, shape index: {}]
  %s1 = inlined_call_operand.vmem [shape: f32[32,128], index: 1, kind: input, shape index: {}]
  %s2 = inlined_call_operand.vmem [shape: f32[8,128], index: 2, kind: output, shape index: {}]
  %s3 = sld [smem:[#allocation0]]
  $region18: #{orthogonal_two_heads.1} parent=0
    _
  %s5 = ssub.s32 1, %s3
  %s6 = scalar_select 0, %s5, %s3
  // Predicated region
  $region2: #{orthogonal_two_heads.1} parent=0 // pred_check
    _
  $region3: #{orthogonal_two_heads.1} parent=0 // pred_check_branch
    %8 = sbr.rel (0) target = $region5
  $region4: #{orthogonal_two_heads.1} parent=0 // pred_region
    _
  $region5: #{orthogonal_two_heads.1} parent=0 // pred_fallthru
    _
  // Predicated region
  $region6: #{orthogonal_two_heads.1} parent=0 // pred_check
    _
  $region7: #{orthogonal_two_heads.1} parent=0 // pred_check_branch
    %10 = sbr.rel (0) target = $region9
  $region8: #{orthogonal_two_heads.1} parent=0 // pred_region
    _
  $region9: #{orthogonal_two_heads.1} parent=0 // pred_fallthru
    _
  %v11 = vld [vmem:[%s0] sm:$0xff]
  %v12 = vld [vmem:[%s1] sm:$0xff]
  %v13 = vld [vmem:[%s1 + $0x8] sm:$0xff]
  %v14 = vld [vmem:[%s1 + $0x10] sm:$0xff]
  %v15 = vld [vmem:[%s1 + $0x18] sm:$0xff]
  %vm16 = vcmask 261120
  %v18 = vsel %vm16, %v11, 0
  %20 = vmatprep.subr.mxu0 0.0
  %21 = vmatpush1.msra.mxu0 0.0
  %22 = vmatprep.subr.mxu0 0.0
  %23 = vmatpush1.msra.mxu0 0.0
  %24 = vmatprep.subr.mxu0 0.0
  %25 = vmatpush1.msra.mxu0 0.0
  %26 = vmatprep.subr.mxu0 0.0
  %27 = vmatpush1.msra.mxu0 0.0
  %28 = vmatprep.subr.mxu0 0.0
  %29 = vmatpush1.msra.mxu0 0.0
  %30 = vmatprep.subr.mxu0 0.0
  %31 = vmatpush1.msra.mxu0 0.0
  %32 = vmatprep.subr.mxu0 0.0
  %33 = vmatpush1.msra.mxu0 0.0
  %34 = vmatprep.subr.mxu0 0.0
  %35 = vmatpush1.msra.mxu0 0.0
  %36 = vmatprep.subr.mxu0 0.0
  %37 = vmatpush1.msra.mxu0 0.0
  %38 = vmatprep.subr.mxu0 0.0
  %39 = vmatpush1.msra.mxu0 0.0
  %40 = vmatprep.subr.mxu0 0.0
  %41 = vmatpush1.msra.mxu0 0.0
  %42 = vmatprep.subr.mxu0 0.0
  %43 = vmatpush1.msra.mxu0 0.0
  %44 = vmatprep.subr.mxu0 0.0
  %45 = vmatpush1.msra.mxu0 %v15
  %46 = vmatprep.subr.mxu0 0.0
  %47 = vmatpush1.msra.mxu0 %v14
  %48 = vmatprep.subr.mxu0 0.0
  %49 = vmatpush1.msra.mxu0 %v13
  %50 = vmatprep.subr.mxu0 0.0
  %51 = vmatpush1.msra.mxu0 %v12
  %52 = vmatprep.subr.mxu0 0.0
  %53 = vmatpush2.msra.mxu0 0.0
  %54 = vmatprep.subr.mxu0 0.0
  %55 = vmatpush2.msra.mxu0 0.0
  %56 = vmatprep.subr.mxu0 0.0
  %57 = vmatpush2.msra.mxu0 0.0
  %58 = vmatprep.subr.mxu0 0.0
  %59 = vmatpush2.msra.mxu0 0.0
  %60 = vmatprep.subr.mxu0 0.0
  %61 = vmatpush2.msra.mxu0 0.0
  %62 = vmatprep.subr.mxu0 0.0
  %63 = vmatpush2.msra.mxu0 0.0
  %64 = vmatprep.subr.mxu0 0.0
  %65 = vmatpush2.msra.mxu0 0.0
  %66 = vmatprep.subr.mxu0 0.0
  %67 = vmatpush2.msra.mxu0 0.0
  %68 = vmatprep.subr.mxu0 0.0
  %69 = vmatpush2.msra.mxu0 0.0
  %70 = vmatprep.subr.mxu0 0.0
  %71 = vmatpush2.msra.mxu0 0.0
  %72 = vmatprep.subr.mxu0 0.0
  %73 = vmatpush2.msra.mxu0 0.0
  %74 = vmatprep.subr.mxu0 0.0
  %75 = vmatpush2.msra.mxu0 0.0
  %76 = vmatprep.subr.mxu0 0.0
  %77 = vmatpush2.msra.mxu0 0.0
  %78 = vmatprep.subr.mxu0 0.0
  %79 = vmatpush2.msra.mxu0 0.0
  %80 = vmatprep.subr.mxu0 0.0
  %81 = vmatpush2.msra.mxu0 0.0
  %82 = vmatprep.subr.mxu0 0.0
  %83 = vmatpush2.msra.mxu0 0.0
  %84 = vmatprep.mubr.f32.mxu0 0.0
  %85 = vmatmul.mubr.f32.gmra.mxu0 %v18
  %v86 = vpop.f32.mrf.mxu0
  %v87 = vadd.f32 0.0, %v86
  %v88 = vpop.f32.mrf.mxu0
  %89 = vdwg.mxu0
  %90 = vst [vmem:[%s2] sm:$0xff] %v87
  // Predicated region
  $region10: #{orthogonal_two_heads.1} parent=0 // pred_check
    _
  $region11: #{orthogonal_two_heads.1} parent=0 // pred_check_branch
    %92 = sbr.rel (0) target = $region13
  $region12: #{orthogonal_two_heads.1} parent=0 // pred_region
    _
  $region13: #{orthogonal_two_heads.1} parent=0 // pred_fallthru
    _
  // Predicated region
  $region14: #{orthogonal_two_heads.1} parent=0 // pred_check
    _
  $region15: #{orthogonal_two_heads.1} parent=0 // pred_check_branch
    %94 = sbr.rel (0) target = $region17
  $region16: #{orthogonal_two_heads.1} parent=0 // pred_region
    _
  $region17: #{orthogonal_two_heads.1} parent=0 // pred_fallthru
    _

</llo_original>
